<compile_context>
chip_gen: v7x
topology: tpu7x:2x2x1
jax: 0.10.0
libtpu: 0.0.40
codegen_flags: <defaults>
</compile_context>

<pallas_src>
import jax
import jax.numpy as jnp
from jax import lax
from jax.experimental import pallas as pl
from jax.experimental.pallas import tpu as pltpu


def _round_up(x, m):
    return ((x + m - 1) // m) * m


def _cdiv(a, b):
    return (a + b - 1) // b


def noise_gen_kernel(n_ref, g_ref, w1a_ref, w1b_ref, b1_ref,
                     w2_ref, b2_ref, w3_ref, b3_ref, o_ref):
    # Input ReLU in f32 (v5e VPU has no native bf16 path), cast to bf16 for MXU.
    xn = jnp.maximum(n_ref[...], 0.0).astype(jnp.bfloat16)          # (tm, 100)
    xg = jnp.maximum(g_ref[...], 0.0).astype(jnp.bfloat16)          # (tm, 100)

    # Layer 1: split-K matmul replaces the removed concat; f32 accumulation.
    h1 = (jnp.dot(xn, w1a_ref[...], preferred_element_type=jnp.float32)
          + jnp.dot(xg, w1b_ref[...], preferred_element_type=jnp.float32)
          + b1_ref[...])
    h1 = jnp.maximum(h1, 0.0).astype(jnp.bfloat16)                   # (tm, 128)

    # Layer 2.
    h2 = jnp.dot(h1, w2_ref[...], preferred_element_type=jnp.float32) + b2_ref[...]
    h2 = jnp.maximum(h2, 0.0)                                        # (tm, 64) f32

    # Layer 3 (out_features=1): contract w3 against h2's hidden dim, producing
    # the result directly as a lane-dense (1, tm) row (no (tm, 1) column).
    row = lax.dot_general(w3_ref[...], h2, (((1,), (1,)), ((), ())),
                          preferred_element_type=jnp.float32)
    row = row + b3_ref[...]                                          # (1, tm)

    # Replicate across the 8 sublanes so every store is a full, unmasked vreg.
    o_ref[...] = jnp.broadcast_to(row[:, None, :], o_ref.shape)


def noise_generator_forward(noise, g_latent, kernel_params, *, block_b=4096):
    """noise: (B, 100) f32, g_latent: (B, 100) f32 -> (B, 1) f32."""
    w1a, w1b, b1, w2, b2, w3_row, b3 = kernel_params
    B, F = noise.shape

    # Sublane-align the batch only when needed (<=7 extra rows; no lane pad,
    # no dtype cast pass -- the kernel consumes the f32 inputs directly).
    b_al = _round_up(B, 8)
    if b_al != B:
        noise = jnp.pad(noise, ((0, b_al - B), (0, 0)))
        g_latent = jnp.pad(g_latent, ((0, b_al - B), (0, 0)))

    # Batch tile: big enough to amortize the ~0.35us/step cost, small enough to
    # stay well under the scoped VMEM limit; keep >=2 grid steps when the batch
    # allows it so v7x's two TensorCores both get work.
    tm = min(_round_up(block_b, 8), b_al)
    if _cdiv(b_al, tm) < 2 and tm >= 16:
        tm = _round_up(_cdiv(tm, 2), 8)
    n_blocks = _cdiv(b_al, tm)

    batch_map = lambda i: (i, 0)
    const_map = lambda i: (0, 0)

    out = pl.pallas_call(
        noise_gen_kernel,
        out_shape=jax.ShapeDtypeStruct((n_blocks, 8, tm), jnp.float32),
        grid=(n_blocks,),
        in_specs=[
            pl.BlockSpec((tm, F), batch_map),     # noise rows (f32, streamed)
            pl.BlockSpec((tm, F), batch_map),     # g_latent rows
            pl.BlockSpec((F, 128), const_map),    # W1a (resident)
            pl.BlockSpec((F, 128), const_map),    # W1b (resident)
            pl.BlockSpec((1, 128), const_map),    # b1
            pl.BlockSpec((128, 64), const_map),   # W2
            pl.BlockSpec((1, 64), const_map),     # b2
            pl.BlockSpec((1, 64), const_map),     # W3 as a row
            pl.BlockSpec((1, 1), const_map),      # b3
        ],
        out_specs=pl.BlockSpec((1, 8, tm), lambda i: (i, 0, 0)),
        compiler_params=pltpu.CompilerParams(
            dimension_semantics=("parallel",),
            vmem_limit_bytes=32 * 1024 * 1024,
        ),
    )(noise, g_latent, w1a, w1b, b1, w2, b2, w3_row, b3)

    # (n_blocks, 8, tm): take sublane 0 of each block, flatten, trim padding.
    return out[:, 0, :].reshape(-1)[:B].reshape(B, 1)


def init_params(key):
    """nn.Linear-style U(-1/sqrt(fan_in), 1/sqrt(fan_in)), stored as (in, out)."""
    def linear(key, fan_in, fan_out):
        kw, kb = jax.random.split(key)
        bound = 1.0 / (fan_in ** 0.5)
        w = jax.random.uniform(kw, (fan_in, fan_out), jnp.float32, -bound, bound)
        b = jax.random.uniform(kb, (1, fan_out), jnp.float32, -bound, bound)
        return w, b

    k1, k2, k3 = jax.random.split(key, 3)
    w1, b1 = linear(k1, 200, 128)
    w2, b2 = linear(k2, 128, 64)
    w3, b3 = linear(k3, 64, 1)
    return (w1, b1, w2, b2, w3, b3)


def pack_params(params):
    """Convert f32 (in,out) params into the kernel layout (split W1, bf16 weights)."""
    w1, b1, w2, b2, w3, b3 = params
    w1a = w1[:100].astype(jnp.bfloat16)       # (100, 128)
    w1b = w1[100:].astype(jnp.bfloat16)       # (100, 128)
    w2b = w2.astype(jnp.bfloat16)             # (128, 64)
    w3_row = w3.T                             # (1, 64) f32
    return (w1a, w1b, b1, w2b, b2, w3_row, b3.reshape(1, 1))


def reference_forward_bf16(noise, g_latent, params):
    """Pure-JAX reference with the same bf16-operand / f32-accum dtype path."""
    w1, b1, w2, b2, w3, b3 = params
    x = jnp.maximum(jnp.concatenate([noise, g_latent], axis=1), 0.0)
    x = x.astype(jnp.bfloat16)
    h1 = jnp.maximum(
        jnp.dot(x, w1.astype(jnp.bfloat16),
                preferred_element_type=jnp.float32) + b1, 0.0)
    h2 = jnp.maximum(
        jnp.dot(h1.astype(jnp.bfloat16), w2.astype(jnp.bfloat16),
                preferred_element_type=jnp.float32) + b2, 0.0)
    return h2 @ w3 + b3


def reference_forward_f32(noise, g_latent, params):
    """Full-precision reference of the original PyTorch module."""
    w1, b1, w2, b2, w3, b3 = params
    x = jnp.maximum(jnp.concatenate([noise, g_latent], axis=1), 0.0)
    x = jnp.maximum(x @ w1 + b1, 0.0)
    x = jnp.maximum(x @ w2 + b2, 0.0)
    return x @ w3 + b3


if __name__ == "__main__":
    key = jax.random.PRNGKey(0)
    k_noise, k_lat, k_params = jax.random.split(key, 3)

    B = 2
    noise = jax.random.normal(k_noise, (B, 100), jnp.float32)
    g_latent = jax.random.normal(k_lat, (B, 100), jnp.float32)
    params = init_params(k_params)
    kparams = pack_params(params)

    out = noise_generator_forward(noise, g_latent, kparams)
    out = jax.block_until_ready(out)
    assert out.shape == (B, 1), out.shape

    # Tight check vs a dtype-matched reference (same bf16 operands, f32 accum).
    ref_bf16 = reference_forward_bf16(noise, g_latent, params)
    assert jnp.allclose(out, ref_bf16, atol=5e-3, rtol=5e-3), (out, ref_bf16)

    # Loose check vs the full-f32 semantics of the original module.
    ref_f32 = reference_forward_f32(noise, g_latent, params)
    assert jnp.allclose(out, ref_f32, atol=5e-2), (out, ref_f32)

    print("KERNEL_OK")
</pallas_src>

<mosaic_0001>
module attributes {stable_mosaic.version = 11 : i64} {
  func.func @noise_gen_kernel(%arg0: i32, %arg1: memref<8x100xf32, #tpu.memory_space<vmem>>, %arg2: memref<8x100xf32, #tpu.memory_space<vmem>>, %arg3: memref<100x128xbf16, #tpu.memory_space<vmem>>, %arg4: memref<100x128xbf16, #tpu.memory_space<vmem>>, %arg5: memref<1x128xf32, #tpu.memory_space<vmem>>, %arg6: memref<128x64xbf16, #tpu.memory_space<vmem>>, %arg7: memref<1x64xf32, #tpu.memory_space<vmem>>, %arg8: memref<1x64xf32, #tpu.memory_space<vmem>>, %arg9: memref<1x1xf32, #tpu.memory_space<vmem>>, %arg10: memref<1x8x8xf32, #tpu.memory_space<vmem>>) attributes {dimension_semantics = [#tpu.dimension_semantics<parallel>], iteration_bounds = array<i64: 1>, scalar_prefetch = 0 : i64, scratch_operands = 0 : i64, tpu.core_type = #tpu.core_type<tc>, window_params = [{transform_indices = @transform_0, window_bounds = array<i64: 8, 100>}, {transform_indices = @transform_1, window_bounds = array<i64: 8, 100>}, {pipeline_mode = #tpu.pipeline_mode<synchronous>, transform_indices = @transform_2, window_bounds = array<i64: 100, 128>}, {pipeline_mode = #tpu.pipeline_mode<synchronous>, transform_indices = @transform_3, window_bounds = array<i64: 100, 128>}, {pipeline_mode = #tpu.pipeline_mode<synchronous>, transform_indices = @transform_4, window_bounds = array<i64: 1, 128>}, {pipeline_mode = #tpu.pipeline_mode<synchronous>, transform_indices = @transform_5, window_bounds = array<i64: 128, 64>}, {pipeline_mode = #tpu.pipeline_mode<synchronous>, transform_indices = @transform_6, window_bounds = array<i64: 1, 64>}, {pipeline_mode = #tpu.pipeline_mode<synchronous>, transform_indices = @transform_7, window_bounds = array<i64: 1, 64>}, {pipeline_mode = #tpu.pipeline_mode<synchronous>, transform_indices = @transform_8, window_bounds = array<i64: 1, 1>}, {transform_indices = @transform_9, window_bounds = array<i64: 1, 8, 8>}]} {
    %c0 = arith.constant 0 : index
    %c0_0 = arith.constant 0 : index
    %0 = vector.load %arg1[%c0, %c0_0] : memref<8x100xf32, #tpu.memory_space<vmem>>, vector<8x100xf32>
    %cst = arith.constant 0.000000e+00 : f32
    %1 = vector.broadcast %cst : f32 to vector<8x100xf32>
    %2 = arith.maximumf %0, %1 : vector<8x100xf32>
    %3 = arith.truncf %2 : vector<8x100xf32> to vector<8x100xbf16>
    %c0_1 = arith.constant 0 : index
    %c0_2 = arith.constant 0 : index
    %4 = vector.load %arg2[%c0_1, %c0_2] : memref<8x100xf32, #tpu.memory_space<vmem>>, vector<8x100xf32>
    %cst_3 = arith.constant 0.000000e+00 : f32
    %5 = vector.broadcast %cst_3 : f32 to vector<8x100xf32>
    %6 = arith.maximumf %4, %5 : vector<8x100xf32>
    %7 = arith.truncf %6 : vector<8x100xf32> to vector<8x100xbf16>
    %c0_4 = arith.constant 0 : index
    %c0_5 = arith.constant 0 : index
    %8 = vector.load %arg3[%c0_4, %c0_5] : memref<100x128xbf16, #tpu.memory_space<vmem>>, vector<100x128xbf16>
    %cst_6 = arith.constant dense<0.000000e+00> : vector<8x128xf32>
    %9 = tpu.matmul %3, %8, %cst_6 {dimension_numbers = #tpu.dot_dimension_numbers<[1], [0], [0], [1], [0, 0, 1, 1], [], []>} : vector<8x100xbf16>, vector<100x128xbf16>, vector<8x128xf32> -> vector<8x128xf32>
    %c0_7 = arith.constant 0 : index
    %c0_8 = arith.constant 0 : index
    %10 = vector.load %arg4[%c0_7, %c0_8] : memref<100x128xbf16, #tpu.memory_space<vmem>>, vector<100x128xbf16>
    %cst_9 = arith.constant dense<0.000000e+00> : vector<8x128xf32>
    %11 = tpu.matmul %7, %10, %cst_9 {dimension_numbers = #tpu.dot_dimension_numbers<[1], [0], [0], [1], [0, 0, 1, 1], [], []>} : vector<8x100xbf16>, vector<100x128xbf16>, vector<8x128xf32> -> vector<8x128xf32>
    %12 = arith.addf %9, %11 : vector<8x128xf32>
    %c0_10 = arith.constant 0 : index
    %c0_11 = arith.constant 0 : index
    %13 = vector.load %arg5[%c0_10, %c0_11] : memref<1x128xf32, #tpu.memory_space<vmem>>, vector<1x128xf32>
    %14 = vector.broadcast %13 : vector<1x128xf32> to vector<8x128xf32>
    %15 = arith.addf %12, %14 : vector<8x128xf32>
    %cst_12 = arith.constant 0.000000e+00 : f32
    %16 = vector.broadcast %cst_12 : f32 to vector<8x128xf32>
    %17 = arith.maximumf %15, %16 : vector<8x128xf32>
    %18 = arith.truncf %17 : vector<8x128xf32> to vector<8x128xbf16>
    %c0_13 = arith.constant 0 : index
    %c0_14 = arith.constant 0 : index
    %19 = vector.load %arg6[%c0_13, %c0_14] : memref<128x64xbf16, #tpu.memory_space<vmem>>, vector<128x64xbf16>
    %cst_15 = arith.constant dense<0.000000e+00> : vector<8x64xf32>
    %20 = tpu.matmul %18, %19, %cst_15 {dimension_numbers = #tpu.dot_dimension_numbers<[1], [0], [0], [1], [0, 0, 1, 1], [], []>} : vector<8x128xbf16>, vector<128x64xbf16>, vector<8x64xf32> -> vector<8x64xf32>
    %c0_16 = arith.constant 0 : index
    %c0_17 = arith.constant 0 : index
    %21 = vector.load %arg7[%c0_16, %c0_17] : memref<1x64xf32, #tpu.memory_space<vmem>>, vector<1x64xf32>
    %22 = vector.broadcast %21 : vector<1x64xf32> to vector<8x64xf32>
    %23 = arith.addf %20, %22 : vector<8x64xf32>
    %cst_18 = arith.constant 0.000000e+00 : f32
    %24 = vector.broadcast %cst_18 : f32 to vector<8x64xf32>
    %25 = arith.maximumf %23, %24 : vector<8x64xf32>
    %c0_19 = arith.constant 0 : index
    %c0_20 = arith.constant 0 : index
    %26 = vector.load %arg8[%c0_19, %c0_20] : memref<1x64xf32, #tpu.memory_space<vmem>>, vector<1x64xf32>
    %cst_21 = arith.constant dense<0.000000e+00> : vector<1x8xf32>
    %27 = tpu.matmul %26, %25, %cst_21 {dimension_numbers = #tpu.dot_dimension_numbers<[1], [1], [0], [0], [0, 0, 1, 0], [], []>} : vector<1x64xf32>, vector<8x64xf32>, vector<1x8xf32> -> vector<1x8xf32>
    %c0_22 = arith.constant 0 : index
    %c0_23 = arith.constant 0 : index
    %28 = vector.load %arg9[%c0_22, %c0_23] : memref<1x1xf32, #tpu.memory_space<vmem>>, vector<1x1xf32>
    %29 = vector.broadcast %28 : vector<1x1xf32> to vector<1x8xf32>
    %30 = arith.addf %27, %29 : vector<1x8xf32>
    %31 = vector.shape_cast %30 : vector<1x8xf32> to vector<1x1x8xf32>
    %32 = vector.shape_cast %31 : vector<1x1x8xf32> to vector<1x1x8xf32>
    %33 = vector.broadcast %32 : vector<1x1x8xf32> to vector<1x8x8xf32>
    %c0_24 = arith.constant 0 : index
    %c0_25 = arith.constant 0 : index
    %c0_26 = arith.constant 0 : index
    %34 = vector.load %arg10[%c0_24, %c0_25, %c0_26] : memref<1x8x8xf32, #tpu.memory_space<vmem>>, vector<1x8x8xf32>
    tpu.vector_store %arg10[%c0_24, %c0_25, %c0_26], %33 {strides = array<i32>} : memref<1x8x8xf32, #tpu.memory_space<vmem>>, vector<1x8x8xf32>,
    return
  }
  func.func @transform_0(%arg0: i32) -> (i32, i32) {
    %c0_i32 = arith.constant 0 : i32
    %c0_i32_0 = arith.constant 0 : i32
    return %arg0, %c0_i32 : i32, i32
  }
  func.func @transform_1(%arg0: i32) -> (i32, i32) {
    %c0_i32 = arith.constant 0 : i32
    %c0_i32_0 = arith.constant 0 : i32
    return %arg0, %c0_i32 : i32, i32
  }
  func.func @transform_2(%arg0: i32) -> (i32, i32) {
    %c0_i32 = arith.constant 0 : i32
    %c0_i32_0 = arith.constant 0 : i32
    %c0_i32_1 = arith.constant 0 : i32
    return %c0_i32, %c0_i32_0 : i32, i32
  }
  func.func @transform_3(%arg0: i32) -> (i32, i32) {
    %c0_i32 = arith.constant 0 : i32
    %c0_i32_0 = arith.constant 0 : i32
    %c0_i32_1 = arith.constant 0 : i32
    return %c0_i32, %c0_i32_0 : i32, i32
  }
  func.func @transform_4(%arg0: i32) -> (i32, i32) {
    %c0_i32 = arith.constant 0 : i32
    %c0_i32_0 = arith.constant 0 : i32
    %c0_i32_1 = arith.constant 0 : i32
    return %c0_i32, %c0_i32_0 : i32, i32
  }
  func.func @transform_5(%arg0: i32) -> (i32, i32) {
    %c0_i32 = arith.constant 0 : i32
    %c0_i32_0 = arith.constant 0 : i32
    %c0_i32_1 = arith.constant 0 : i32
    return %c0_i32, %c0_i32_0 : i32, i32
  }
  func.func @transform_6(%arg0: i32) -> (i32, i32) {
    %c0_i32 = arith.constant 0 : i32
    %c0_i32_0 = arith.constant 0 : i32
    %c0_i32_1 = arith.constant 0 : i32
    return %c0_i32, %c0_i32_0 : i32, i32
  }
  func.func @transform_7(%arg0: i32) -> (i32, i32) {
    %c0_i32 = arith.constant 0 : i32
    %c0_i32_0 = arith.constant 0 : i32
    %c0_i32_1 = arith.constant 0 : i32
    return %c0_i32, %c0_i32_0 : i32, i32
  }
  func.func @transform_8(%arg0: i32) -> (i32, i32) {
    %c0_i32 = arith.constant 0 : i32
    %c0_i32_0 = arith.constant 0 : i32
    %c0_i32_1 = arith.constant 0 : i32
    return %c0_i32, %c0_i32_0 : i32, i32
  }
  func.func @transform_9(%arg0: i32) -> (i32, i32, i32) {
    %c0_i32 = arith.constant 0 : i32
    %c0_i32_0 = arith.constant 0 : i32
    %c0_i32_1 = arith.constant 0 : i32
    return %arg0, %c0_i32, %c0_i32_0 : i32, i32, i32
  }
}

</mosaic_0001>

<llo_original>
// kernel: tpu_custom_call.1
$region0: #{tpu_custom_call.1}
  #allocation0 [shape = 'u32[]', space=smem, size = 0x4, offset = 0x4, fixed_abs, tag = 'smem constant byte address 0x4 - core index']
  #allocation1 [shape = 'u32[144,128]{1,0:T(1,128)}', space=vmem, size = 0x12000, scoped, tag = 'internal scratch']
  #allocation2 [shape = 'f32[1,1]{1,0:T(1,128)S(1)}', space=vmem, size = 0x200, scoped, tag = 'scoped memory for tpu_custom_call.1']
  %s0 = inlined_call_operand.hbm [shape: f32[8,100], index: 0, kind: input, shape index: {}]
  %s1 = inlined_call_operand.hbm [shape: f32[8,100], index: 1, kind: input, shape index: {}]
  %s2 = inlined_call_operand.vmem [shape: bf16[100,128], index: 2, kind: input, shape index: {}]
  %s3 = inlined_call_operand.vmem [shape: bf16[100,128], index: 3, kind: input, shape index: {}]
  %s4 = inlined_call_operand.vmem [shape: f32[1,128], index: 4, kind: input, shape index: {}]
  %s5 = inlined_call_operand.vmem [shape: bf16[128,64], index: 5, kind: input, shape index: {}]
  %s6 = inlined_call_operand.vmem [shape: f32[1,64], index: 6, kind: input, shape index: {}]
  %s7 = inlined_call_operand.vmem [shape: f32[1,64], index: 7, kind: input, shape index: {}]
  %s8 = inlined_call_operand.<no memory space> [shape: f32[1,1], index: 8, kind: input, shape index: {}]
  %s9 = inlined_call_operand.hbm [shape: f32[1,8,8], index: 9, kind: output, shape index: {}]
  %s10 = sld [smem:[#allocation0]]
  $region54: #{tpu_custom_call.1} parent=0
    _
  %s12 = ssub.s32 1, %s10
  %s13 = scalar_select 0, %s12, %s10
  %v14 = vstv %s8
  %15 = vst [vmem:[#allocation2] sm:$0x1] %v14
  $region1: #{tpu_custom_call.1} parent=0
    #allocation3 [shape = 'u8[4096]{0}', space=vmem, size = 0x1000, scoped, tag = 'input window, operand 0, single buffered']
    #allocation4 [shape = 's32[1]{0}', space=sflag, size = 0x4, scoped, tag = 'scoped memory for tpu_custom_call.1']
    #allocation5 [shape = 's32[1]{0}', space=sflag, size = 0x4, scoped, tag = 'scoped memory for tpu_custom_call.1']
    #allocation6 [shape = 'u8[4096]{0}', space=vmem, size = 0x1000, scoped, tag = 'input window, operand 1, single buffered']
    #allocation7 [shape = 's32[1]{0}', space=sflag, size = 0x4, scoped, tag = 'scoped memory for tpu_custom_call.1']
    #allocation8 [shape = 'u8[4096]{0}', space=vmem, size = 0x1000, scoped, tag = 'output window, operand 0, single buffered']
    %16 = vsyncpa [#allocation4], 0
    %17 = vsyncpa [#allocation7], 0
    %18 = vsyncpa [#allocation5], 0
    // Predicated region
    $region2: #{tpu_custom_call.1} parent=1 // pred_check
      _
    $region3: #{tpu_custom_call.1} parent=1 // pred_check_branch
      %20 = sbr.rel (0) target = $region5
    $region4: #{tpu_custom_call.1} parent=1 // pred_region
      %s22 = ssub.s32 128, 128
      %23 = vsyncadd [#allocation4], %s22
      %s25 = sshll.u32 [#allocation3], 4
      %s26 = int_to_ptr.vmem [resolvable:$true] %s25
      %28 = dma.hbm_to_vmem [thread:$0]  %s0, 128, %s26, [#allocation4]
    $region5: #{tpu_custom_call.1} parent=1 // pred_fallthru
      _
    // Predicated region
    $region6: #{tpu_custom_call.1} parent=1 // pred_check
      _
    $region7: #{tpu_custom_call.1} parent=1 // pred_check_branch
      %30 = sbr.rel (0) target = $region9
    $region8: #{tpu_custom_call.1} parent=1 // pred_region
      %s32 = ssub.s32 128, 128
      %33 = vsyncadd [#allocation7], %s32
      %s35 = sshll.u32 [#allocation6], 4
      %s36 = int_to_ptr.vmem [resolvable:$true] %s35
      %38 = dma.hbm_to_vmem [thread:$0]  %s1, 128, %s36, [#allocation7]
    $region9: #{tpu_custom_call.1} parent=1 // pred_fallthru
      _
    // Predicated region
    $region10: #{tpu_custom_call.1} parent=1 // pred_check
      _
    $region11: #{tpu_custom_call.1} parent=1 // pred_check_branch
      %40 = sbr.rel (0) target = $region13
    $region12: #{tpu_custom_call.1} parent=1 // pred_region
      _
    $region13: #{tpu_custom_call.1} parent=1 // pred_fallthru
      _
    // Predicated region
    $region14: #{tpu_custom_call.1} parent=1 // pred_check
      _
    $region15: #{tpu_custom_call.1} parent=1 // pred_check_branch
      %42 = sbr.rel (0) target = $region17
    $region16: #{tpu_custom_call.1} parent=1 // pred_region
      _
    $region17: #{tpu_custom_call.1} parent=1 // pred_fallthru
      _
    // Predicated region
    $region18: #{tpu_custom_call.1} parent=1 // pred_check
      _
    $region19: #{tpu_custom_call.1} parent=1 // pred_check_branch
      %44 = sbr.rel (0) target = $region21
    $region20: #{tpu_custom_call.1} parent=1 // pred_region
      _
    $region21: #{tpu_custom_call.1} parent=1 // pred_fallthru
      _
    // Predicated region
    $region22: #{tpu_custom_call.1} parent=1 // pred_check
      _
    $region23: #{tpu_custom_call.1} parent=1 // pred_check_branch
      %46 = sbr.rel (0) target = $region25
    $region24: #{tpu_custom_call.1} parent=1 // pred_region
      _
    $region25: #{tpu_custom_call.1} parent=1 // pred_fallthru
      _
    // Predicated region
    $region26: #{tpu_custom_call.1} parent=1 // pred_check
      _
    $region27: #{tpu_custom_call.1} parent=1 // pred_check_branch
      %48 = sbr.rel (0) target = $region29
    $region28: #{tpu_custom_call.1} parent=1 // pred_region
      _
    $region29: #{tpu_custom_call.1} parent=1 // pred_fallthru
      _
    // Predicated region
    $region30: #{tpu_custom_call.1} parent=1 // pred_check
      _
    $region31: #{tpu_custom_call.1} parent=1 // pred_check_branch
      %50 = sbr.rel (0) target = $region33
    $region32: #{tpu_custom_call.1} parent=1 // pred_region
      _
    $region33: #{tpu_custom_call.1} parent=1 // pred_fallthru
      _
    // Predicated region
    $region34: #{tpu_custom_call.1} parent=1 // pred_check
      _
    $region35: #{tpu_custom_call.1} parent=1 // pred_check_branch
      %52 = sbr.rel (0) target = $region37
    $region36: #{tpu_custom_call.1} parent=1 // pred_region
      _
    $region37: #{tpu_custom_call.1} parent=1 // pred_fallthru
      _
    // Predicated region
    $region38: #{tpu_custom_call.1} parent=1 // pred_check
      _
    $region39: #{tpu_custom_call.1} parent=1 // pred_check_branch
      %54 = sbr.rel (0) target = $region41
    $region40: #{tpu_custom_call.1} parent=1 // pred_region
      %55 = dma.done [#allocation4], 128
    $region41: #{tpu_custom_call.1} parent=1 // pred_fallthru
      _
    // Predicated region
    $region42: #{tpu_custom_call.1} parent=1 // pred_check
      _
    $region43: #{tpu_custom_call.1} parent=1 // pred_check_branch
      %57 = sbr.rel (0) target = $region45
    $region44: #{tpu_custom_call.1} parent=1 // pred_region
      %58 = dma.done [#allocation7], 128
    $region45: #{tpu_custom_call.1} parent=1 // pred_fallthru
      _
    %v60 = vld [vmem:[#allocation3] sm:$0xff]
    %v61 = vmax.f32 %v60, 0.0
    %v62 = vpack.c.bf16 %v61, %v61
    %v63 = vld [vmem:[#allocation6] sm:$0xff]
    %v64 = vmax.f32 %v63, 0.0
    %v65 = vpack.c.bf16 %v64, %v64
    %v66 = vld [vmem:[%s2] sm:$0xf]
    %v67 = vld [vmem:[%s2 + $0x4] sm:$0xf]
    %v68 = vld [vmem:[%s2 + $0x8] sm:$0xf]
    %v69 = vld [vmem:[%s2 + $0xc] sm:$0xf]
    %v70 = vld [vmem:[%s2 + $0x10] sm:$0xf]
    %v71 = vld [vmem:[%s2 + $0x14] sm:$0xf]
    %v72 = vld [vmem:[%s2 + $0x18] sm:$0xf]
    %v73 = vld [vmem:[%s2 + $0x1c] sm:$0xf]
    %v74 = vld [vmem:[%s2 + $0x20] sm:$0xf]
    %v75 = vld [vmem:[%s2 + $0x24] sm:$0xf]
    %v76 = vld [vmem:[%s2 + $0x28] sm:$0xf]
    %v77 = vld [vmem:[%s2 + $0x2c] sm:$0xf]
    %v78 = vld [vmem:[%s2 + $0x30] sm:$0x3]
    %v79 = vld [vmem:[%s3] sm:$0xf]
    %v80 = vld [vmem:[%s3 + $0x4] sm:$0xf]
    %v81 = vld [vmem:[%s3 + $0x8] sm:$0xf]
    %v82 = vld [vmem:[%s3 + $0xc] sm:$0xf]
    %v83 = vld [vmem:[%s3 + $0x10] sm:$0xf]
    %v84 = vld [vmem:[%s3 + $0x14] sm:$0xf]
    %v85 = vld [vmem:[%s3 + $0x18] sm:$0xf]
    %v86 = vld [vmem:[%s3 + $0x1c] sm:$0xf]
    %v87 = vld [vmem:[%s3 + $0x20] sm:$0xf]
    %v88 = vld [vmem:[%s3 + $0x24] sm:$0xf]
    %v89 = vld [vmem:[%s3 + $0x28] sm:$0xf]
    %v90 = vld [vmem:[%s3 + $0x2c] sm:$0xf]
    %v91 = vld [vmem:[%s3 + $0x30] sm:$0x3]
    %v105 = vunpack.c.l.b16 %v79
    %v106 = vunpack.c.l.b16 %v80
    %v107 = vunpack.c.l.b16 %v81
    %v108 = vunpack.c.l.b16 %v82
    %v109 = vunpack.c.l.b16 %v83
    %v110 = vunpack.c.l.b16 %v84
    %v111 = vunpack.c.l.b16 %v85
    %v112 = vunpack.c.l.b16 %v86
    %v113 = vunpack.c.l.b16 %v87
    %v114 = vunpack.c.l.b16 %v88
    %v115 = vunpack.c.l.b16 %v89
    %v116 = vunpack.c.l.b16 %v90
    %v117 = vunpack.c.l.b16 %v91
    %v118 = vpack.c.b16 %v106, %v105
    %v119 = vpack.c.b16 %v108, %v107
    %v120 = vpack.c.b16 %v110, %v109
    %v121 = vpack.c.b16 %v112, %v111
    %v122 = vpack.c.b16 %v114, %v113
    %v123 = vpack.c.b16 %v116, %v115
    %v124 = vpack.c.b16 %v117, %v117
    %vm131 = vcmask 818176
    %v133 = vsel %vm131, %v65, 0
    %vm135 = vcmask 1041408
    %v137 = vsel %vm135, %v124, 0
    %139 = vmatprep.subr.bf16.mxu0 0
    %140 = vmatpush1.bf16.msra.mxu0 %v118
    %141 = vmatprep.subr.bf16.mxu0 0
    %142 = vmatpush1.bf16.msra.mxu0 %v119
    %143 = vmatprep.subr.bf16.mxu0 0
    %144 = vmatpush1.bf16.msra.mxu0 %v120
    %145 = vmatprep.subr.bf16.mxu0 0
    %146 = vmatpush1.bf16.msra.mxu0 %v121
    %147 = vmatprep.subr.bf16.mxu0 0
    %148 = vmatpush1.bf16.msra.mxu0 %v122
    %149 = vmatprep.subr.bf16.mxu0 0
    %150 = vmatpush1.bf16.msra.mxu0 %v123
    %151 = vmatprep.subr.bf16.mxu0 0
    %152 = vmatpush1.bf16.msra.mxu0 %v137
    %153 = vmatprep.subr.bf16.mxu0 0
    %154 = vmatpush1.bf16.msra.mxu0 0
    %155 = vmatprep.subr.bf16.mxu0 0
    %156 = vmatpush1.bf16.msra.mxu0 0
    %157 = vmatprep.subr.bf16.mxu0 0
    %158 = vmatpush1.bf16.msra.mxu0 0
    %159 = vmatprep.subr.bf16.mxu0 0
    %160 = vmatpush1.bf16.msra.mxu0 0
    %161 = vmatprep.subr.bf16.mxu0 0
    %162 = vmatpush1.bf16.msra.mxu0 0
    %163 = vmatprep.subr.bf16.mxu0 0
    %164 = vmatpush1.bf16.msra.mxu0 0
    %165 = vmatprep.subr.bf16.mxu0 0
    %166 = vmatpush1.bf16.msra.mxu0 0
    %167 = vmatprep.subr.bf16.mxu0 0
    %168 = vmatpush1.bf16.msra.mxu0 0
    %169 = vmatprep.subr.bf16.mxu0 0
    %170 = vmatpush1.bf16.msra.mxu0 0
    %171 = vmatprep.mubr.bf16.mxu0 0
    %172 = vmatmul.mubr.bf16.gmra.mrb[0].mxu0 %v133
    %v173 = vpop.f32.mrb[0].mxu0
    %v174 = vadd.f32 0.0, %v173
    %v175 = vpop.f32.mrb[0].mxu0
    %v176 = vpop.f32.mrb[0].mxu0
    %v177 = vpop.f32.mrb[0].mxu0
    %178 = vdwg.mxu0
    %v192 = vunpack.c.l.b16 %v66
    %v193 = vunpack.c.l.b16 %v67
    %v194 = vunpack.c.l.b16 %v68
    %v195 = vunpack.c.l.b16 %v69
    %v196 = vunpack.c.l.b16 %v70
    %v197 = vunpack.c.l.b16 %v71
    %v198 = vunpack.c.l.b16 %v72
    %v199 = vunpack.c.l.b16 %v73
    %v200 = vunpack.c.l.b16 %v74
    %v201 = vunpack.c.l.b16 %v75
    %v202 = vunpack.c.l.b16 %v76
    %v203 = vunpack.c.l.b16 %v77
    %v204 = vunpack.c.l.b16 %v78
    %v205 = vpack.c.b16 %v193, %v192
    %v206 = vpack.c.b16 %v195, %v194
    %v207 = vpack.c.b16 %v197, %v196
    %v208 = vpack.c.b16 %v199, %v198
    %v209 = vpack.c.b16 %v201, %v200
    %v210 = vpack.c.b16 %v203, %v202
    %v211 = vpack.c.b16 %v204, %v204
    %v219 = vsel %vm131, %v62, 0
    %v222 = vsel %vm135, %v211, 0
    %224 = vmatprep.subr.bf16.mxu0 0
    %225 = vmatpush1.bf16.msra.mxu0 %v205
    %226 = vmatprep.subr.bf16.mxu0 0
    %227 = vmatpush1.bf16.msra.mxu0 %v206
    %228 = vmatprep.subr.bf16.mxu0 0
    %229 = vmatpush1.bf16.msra.mxu0 %v207
    %230 = vmatprep.subr.bf16.mxu0 0
    %231 = vmatpush1.bf16.msra.mxu0 %v208
    %232 = vmatprep.subr.bf16.mxu0 0
    %233 = vmatpush1.bf16.msra.mxu0 %v209
    %234 = vmatprep.subr.bf16.mxu0 0
    %235 = vmatpush1.bf16.msra.mxu0 %v210
    %236 = vmatprep.subr.bf16.mxu0 0
    %237 = vmatpush1.bf16.msra.mxu0 %v222
    %238 = vmatprep.subr.bf16.mxu0 0
    %239 = vmatpush1.bf16.msra.mxu0 0
    %240 = vmatprep.subr.bf16.mxu0 0
    %241 = vmatpush1.bf16.msra.mxu0 0
    %242 = vmatprep.subr.bf16.mxu0 0
    %243 = vmatpush1.bf16.msra.mxu0 0
    %244 = vmatprep.subr.bf16.mxu0 0
    %245 = vmatpush1.bf16.msra.mxu0 0
    %246 = vmatprep.subr.bf16.mxu0 0
    %247 = vmatpush1.bf16.msra.mxu0 0
    %248 = vmatprep.subr.bf16.mxu0 0
    %249 = vmatpush1.bf16.msra.mxu0 0
    %250 = vmatprep.subr.bf16.mxu0 0
    %251 = vmatpush1.bf16.msra.mxu0 0
    %252 = vmatprep.subr.bf16.mxu0 0
    %253 = vmatpush1.bf16.msra.mxu0 0
    %254 = vmatprep.subr.bf16.mxu0 0
    %255 = vmatpush1.bf16.msra.mxu0 0
    %256 = vmatprep.mubr.bf16.mxu0 0
    %257 = vmatmul.mubr.bf16.gmra.mrb[0].mxu0 %v219
    %v258 = vpop.f32.mrb[0].mxu0
    %v259 = vadd.f32 %v174, %v258
    %v260 = vpop.f32.mrb[0].mxu0
    %v261 = vpop.f32.mrb[0].mxu0
    %v262 = vpop.f32.mrb[0].mxu0
    %263 = vdwg.mxu0
    %v264 = vld [vmem:[%s4] sm:$0x1]
    %v266 = vlaneseq
    %v267 = vshrl.u32 %v266, 7
    %v268 = vsub.s32 0, %v267
    %v269 = vrot.slane %v264, %v268
    %v271 = vadd.f32 %v259, %v269
    %v272 = vmax.f32 %v271, 0.0
    %v273 = vpack.c.bf16 %v272, %v272
    %v274 = vld [vmem:[%s5] sm:$0xf]
    %v275 = vld [vmem:[%s5 + $0x4] sm:$0xf]
    %v276 = vld [vmem:[%s5 + $0x8] sm:$0xf]
    %v277 = vld [vmem:[%s5 + $0xc] sm:$0xf]
    %v278 = vld [vmem:[%s5 + $0x10] sm:$0xf]
    %v279 = vld [vmem:[%s5 + $0x14] sm:$0xf]
    %v280 = vld [vmem:[%s5 + $0x18] sm:$0xf]
    %v281 = vld [vmem:[%s5 + $0x1c] sm:$0xf]
    %v282 = vld [vmem:[%s5 + $0x20] sm:$0xf]
    %v283 = vld [vmem:[%s5 + $0x24] sm:$0xf]
    %v284 = vld [vmem:[%s5 + $0x28] sm:$0xf]
    %v285 = vld [vmem:[%s5 + $0x2c] sm:$0xf]
    %v286 = vld [vmem:[%s5 + $0x30] sm:$0xf]
    %v287 = vld [vmem:[%s5 + $0x34] sm:$0xf]
    %v288 = vld [vmem:[%s5 + $0x38] sm:$0xf]
    %v289 = vld [vmem:[%s5 + $0x3c] sm:$0xf]
    %v290 = vld [vmem:[%s6] sm:$0x1]
    %v292 = vlaneseq
    %v293 = vshrl.u32 %v292, 7
    %v294 = vsub.s32 0, %v293
    %v295 = vrot.slane %v290, %v294
    %v313 = vunpack.c.l.b16 %v274
    %v314 = vunpack.c.l.b16 %v275
    %v315 = vunpack.c.l.b16 %v276
    %v316 = vunpack.c.l.b16 %v277
    %v317 = vunpack.c.l.b16 %v278
    %v318 = vunpack.c.l.b16 %v279
    %v319 = vunpack.c.l.b16 %v280
    %v320 = vunpack.c.l.b16 %v281
    %v321 = vunpack.c.l.b16 %v282
    %v322 = vunpack.c.l.b16 %v283
    %v323 = vunpack.c.l.b16 %v284
    %v324 = vunpack.c.l.b16 %v285
    %v325 = vunpack.c.l.b16 %v286
    %v326 = vunpack.c.l.b16 %v287
    %v327 = vunpack.c.l.b16 %v288
    %v328 = vunpack.c.l.b16 %v289
    %v329 = vpack.c.b16 %v314, %v313
    %v330 = vpack.c.b16 %v316, %v315
    %v331 = vpack.c.b16 %v318, %v317
    %v332 = vpack.c.b16 %v320, %v319
    %v333 = vpack.c.b16 %v322, %v321
    %v334 = vpack.c.b16 %v324, %v323
    %v335 = vpack.c.b16 %v326, %v325
    %v336 = vpack.c.b16 %v328, %v327
    %345 = vmatprep.subr.bf16.mxu0 0
    %346 = vmatpush1.bf16.msra.mxu0 %v329
    %347 = vmatprep.subr.bf16.mxu0 0
    %348 = vmatpush1.bf16.msra.mxu0 %v330
    %349 = vmatprep.subr.bf16.mxu0 0
    %350 = vmatpush1.bf16.msra.mxu0 %v331
    %351 = vmatprep.subr.bf16.mxu0 0
    %352 = vmatpush1.bf16.msra.mxu0 %v332
    %353 = vmatprep.subr.bf16.mxu0 0
    %354 = vmatpush1.bf16.msra.mxu0 %v333
    %355 = vmatprep.subr.bf16.mxu0 0
    %356 = vmatpush1.bf16.msra.mxu0 %v334
    %357 = vmatprep.subr.bf16.mxu0 0
    %358 = vmatpush1.bf16.msra.mxu0 %v335
    %359 = vmatprep.subr.bf16.mxu0 0
    %360 = vmatpush1.bf16.msra.mxu0 %v336
    %361 = vmatprep.subr.bf16.mxu0 0
    %362 = vmatpush1.bf16.msra.mxu0 0
    %363 = vmatprep.subr.bf16.mxu0 0
    %364 = vmatpush1.bf16.msra.mxu0 0
    %365 = vmatprep.subr.bf16.mxu0 0
    %366 = vmatpush1.bf16.msra.mxu0 0
    %367 = vmatprep.subr.bf16.mxu0 0
    %368 = vmatpush1.bf16.msra.mxu0 0
    %369 = vmatprep.subr.bf16.mxu0 0
    %370 = vmatpush1.bf16.msra.mxu0 0
    %371 = vmatprep.subr.bf16.mxu0 0
    %372 = vmatpush1.bf16.msra.mxu0 0
    %373 = vmatprep.subr.bf16.mxu0 0
    %374 = vmatpush1.bf16.msra.mxu0 0
    %375 = vmatprep.subr.bf16.mxu0 0
    %376 = vmatpush1.bf16.msra.mxu0 0
    %377 = vmatprep.mubr.bf16.mxu0 0
    %378 = vmatmul.mubr.bf16.gmra.mrb[0].mxu0 %v273
    %v379 = vpop.f32.mrb[0].mxu0
    %v380 = vadd.f32 %v295, %v379
    %v381 = vpop.f32.mrb[0].mxu0
    %v382 = vpop.f32.mrb[0].mxu0
    %v383 = vpop.f32.mrb[0].mxu0
    %384 = vdwg.mxu0
    %v385 = vmax.f32 %v380, 0.0
    %v386 = vld [vmem:[%s7] sm:$0x1]
    %v387 = vld [vmem:[#allocation2] sm:$0x1]
    %389 = vset.pattern.permute.xlu0 0
    %390 = vperm.xlu0 %389, %v387
    %v391 = vpop.permute.xlu0 %390
    %v393 = vlaneseq
    %v394 = vshrl.u32 %v393, 7
    %v395 = vsub.s32 0, %v394
    %v396 = vrot.slane %v391, %v395
    %vm397 = vcmask 523264
    %v399 = vsel %vm397, %v386, 0
    %v402 = vsel %vm397, %v385, 0
    %404 = vmatprep.subr.mxu0 0.0
    %405 = vmatpush1.xpose.msra.mxu0 %v402
    %406 = vmatprep.subr.mxu0 0.0
    %407 = vmatpush1.xpose.msra.mxu0 0.0
    %408 = vmatprep.subr.mxu0 0.0
    %409 = vmatpush1.xpose.msra.mxu0 0.0
    %410 = vmatprep.subr.mxu0 0.0
    %411 = vmatpush1.xpose.msra.mxu0 0.0
    %412 = vmatprep.subr.mxu0 0.0
    %413 = vmatpush1.xpose.msra.mxu0 0.0
    %414 = vmatprep.subr.mxu0 0.0
    %415 = vmatpush1.xpose.msra.mxu0 0.0
    %416 = vmatprep.subr.mxu0 0.0
    %417 = vmatpush1.xpose.msra.mxu0 0.0
    %418 = vmatprep.subr.mxu0 0.0
    %419 = vmatpush1.xpose.msra.mxu0 0.0
    %420 = vmatprep.subr.mxu0 0.0
    %421 = vmatpush1.xpose.msra.mxu0 0.0
    %422 = vmatprep.subr.mxu0 0.0
    %423 = vmatpush1.xpose.msra.mxu0 0.0
    %424 = vmatprep.subr.mxu0 0.0
    %425 = vmatpush1.xpose.msra.mxu0 0.0
    %426 = vmatprep.subr.mxu0 0.0
    %427 = vmatpush1.xpose.msra.mxu0 0.0
    %428 = vmatprep.subr.mxu0 0.0
    %429 = vmatpush1.xpose.msra.mxu0 0.0
    %430 = vmatprep.subr.mxu0 0.0
    %431 = vmatpush1.xpose.msra.mxu0 0.0
    %432 = vmatprep.subr.mxu0 0.0
    %433 = vmatpush1.xpose.msra.mxu0 0.0
    %434 = vmatprep.subr.mxu0 0.0
    %435 = vmatpush1.xpose.msra.mxu0 0.0
    %436 = vmatprep.subr.mxu0 0.0
    %437 = vmatpush1.xpose.msra.mxu0 0.0
    %438 = vmatprep.subr.mxu0 0.0
    %439 = vmatpush1.xpose.msra.mxu0 0.0
    %440 = vmatprep.subr.mxu0 0.0
    %441 = vmatpush1.xpose.msra.mxu0 0.0
    %442 = vmatprep.subr.mxu0 0.0
    %443 = vmatpush1.xpose.msra.mxu0 0.0
    %444 = vmatprep.subr.mxu0 0.0
    %445 = vmatpush1.xpose.msra.mxu0 0.0
    %446 = vmatprep.subr.mxu0 0.0
    %447 = vmatpush1.xpose.msra.mxu0 0.0
    %448 = vmatprep.subr.mxu0 0.0
    %449 = vmatpush1.xpose.msra.mxu0 0.0
    %450 = vmatprep.subr.mxu0 0.0
    %451 = vmatpush1.xpose.msra.mxu0 0.0
    %452 = vmatprep.subr.mxu0 0.0
    %453 = vmatpush1.xpose.msra.mxu0 0.0
    %454 = vmatprep.subr.mxu0 0.0
    %455 = vmatpush1.xpose.msra.mxu0 0.0
    %456 = vmatprep.subr.mxu0 0.0
    %457 = vmatpush1.xpose.msra.mxu0 0.0
    %458 = vmatprep.subr.mxu0 0.0
    %459 = vmatpush1.xpose.msra.mxu0 0.0
    %460 = vmatprep.subr.mxu0 0.0
    %461 = vmatpush1.xpose.msra.mxu0 0.0
    %462 = vmatprep.subr.mxu0 0.0
    %463 = vmatpush1.xpose.msra.mxu0 0.0
    %464 = vmatprep.subr.mxu0 0.0
    %465 = vmatpush1.xpose.msra.mxu0 0.0
    %466 = vmatprep.subr.mxu0 0.0
    %467 = vmatpush1.xpose.msra.mxu0 0.0
    %468 = vmatprep.mubr.f32.mxu0 0.0
    %469 = vmatmul.mubr.f32.gmra.mrb[0].mxu0 %v399
    %v470 = vpop.f32.mrb[0].mxu0
    %v471 = vadd.f32 %v396, %v470
    %v472 = vpop.f32.mrb[0].mxu0
    %473 = vdwg.mxu0
    %v474 = vlaneseq
    %v475 = vshrl.u32 %v474, 7
    %v476 = vsub.s32 0, %v475
    %v477 = vrot.slane %v471, %v476
    %vm478 = vcmask 64512
    %479 = vst.msk [vmem:[#allocation8] sm:$0xff] %vm478, %v477
    // Predicated region
    $region46: #{tpu_custom_call.1} parent=1 // pred_check
      _
    $region47: #{tpu_custom_call.1} parent=1 // pred_check_branch
      %481 = sbr.rel (0) target = $region49
    $region48: #{tpu_custom_call.1} parent=1 // pred_region
      %s483 = ssub.s32 128, 128
      %484 = vsyncadd [#allocation5], %s483
      %s486 = sshll.u32 [#allocation8], 4
      %s487 = int_to_ptr.vmem [resolvable:$true] %s486
      %489 = dma.vmem_to_hbm [thread:$0]  %s487, 128, %s9, [#allocation5]
    $region49: #{tpu_custom_call.1} parent=1 // pred_fallthru
      _
    // Predicated region
    $region50: #{tpu_custom_call.1} parent=1 // pred_check
      _
    $region51: #{tpu_custom_call.1} parent=1 // pred_check_branch
      %491 = sbr.rel (0) target = $region53
    $region52: #{tpu_custom_call.1} parent=1 // pred_region
      %492 = dma.done [#allocation5], 128
    $region53: #{tpu_custom_call.1} parent=1 // pred_fallthru
      _
    %493 = vsyncpa [#allocation4], 1
    %494 = vsyncpa [#allocation7], 1
    %495 = vsyncpa [#allocation5], 1

</llo_original>
